<compile_context>
chip_gen: v5e
topology: v5e:2x2
jax: 0.10.0
libtpu: 0.0.40
codegen_flags: <defaults>
</compile_context>

<pallas_src>
import math

import jax
import jax.numpy as jnp
from jax.experimental import pallas as pl
from jax.experimental.pallas import tpu as pltpu


def relative_positional_embedding_pallas(embed, start_row, n_rows):
    """Copy rows [start_row, start_row + n_rows) of `embed` with one HBM->HBM DMA."""
    num_emb, dim = embed.shape
    start_row = int(start_row)
    n_rows = int(n_rows)

    def kernel(embed_hbm, out_hbm, copy_sem):
        # embed_hbm : HBM f32[num_emb, D]  raw ref (memory_space=pl.ANY, no auto-DMA)
        # out_hbm   : HBM f32[n_rows, D]   raw output ref (memory_space=pl.ANY)
        # Single direct HBM->HBM DMA: the source row slice is full-width and
        # therefore byte-contiguous, as is the destination.
        cp = pltpu.make_async_copy(
            embed_hbm.at[pl.ds(start_row, n_rows), :],
            out_hbm,
            copy_sem,
        )
        cp.start()
        cp.wait()

    return pl.pallas_call(
        kernel,
        out_shape=jax.ShapeDtypeStruct((n_rows, dim), embed.dtype),
        in_specs=[pl.BlockSpec(memory_space=pl.ANY)],   # table stays in HBM
        out_specs=pl.BlockSpec(memory_space=pl.ANY),    # output written directly in HBM
        scratch_shapes=[pltpu.SemaphoreType.DMA],
    )(embed)


def make_relative_positional_embedding_params(key, embedding_dim, padding_idx,
                                              init_size):
    """Matches the PyTorch module's __init__ (host-side, not a kernel).

    nn.init.xavier_normal_ on (num_embeddings, embedding_dim):
    std = sqrt(2 / (fan_in + fan_out)); padding row zeroed.
    """
    assert init_size % 2 == 0
    num_embeddings = init_size + 1
    std = math.sqrt(2.0 / (num_embeddings + embedding_dim))
    embed = std * jax.random.normal(key, (num_embeddings, embedding_dim),
                                    dtype=jnp.float32)
    embed = embed.at[padding_idx].set(0.0)
    origin_shift = num_embeddings // 2 + 1
    return embed, origin_shift


def relative_positional_embedding_forward(embed, origin_shift, input_tokens):
    """Forward pass matching the PyTorch module.

    input_tokens: i32[bsz, seq_len] (only the shape is used; output has no batch
    dim, exactly like the PyTorch module).
    Returns f32[2*seq_len, embedding_dim] == embed[arange(-L, L) + origin_shift].

    seq_len must be static (it is, under jit, since it comes from the shape).
    """
    bsz, seq_len = input_tokens.shape
    num_emb = embed.shape[0]
    start = int(origin_shift) - seq_len
    n_rows = 2 * seq_len
    # Explicit bounds check: TPU DMA sources are not safely bounds-checked, and
    # the PyTorch module would also fail for out-of-range positions.
    # TODO(synk): the original PyTorch class never grows the table either; this
    # mirrors that behavior by raising instead of regenerating embeddings.
    if start < 0 or start + n_rows > num_emb:
        raise ValueError(
            f"seq_len={seq_len} too large for table with {num_emb} rows "
            f"(origin_shift={origin_shift}); positions would be out of range.")
    return relative_positional_embedding_pallas(embed, start, n_rows)


if __name__ == "__main__":
    key = jax.random.PRNGKey(0)
    k_embed, k_input = jax.random.split(key)

    embedding_dim = 32
    padding_idx = 0
    init_size = 64          # small, even
    bsz, seq_len = 2, 8     # forward only uses the shape of `input`

    embed, origin_shift = make_relative_positional_embedding_params(
        k_embed, embedding_dim, padding_idx, init_size)

    input_tokens = jax.random.randint(k_input, (bsz, seq_len), 0, init_size,
                                      dtype=jnp.int32)

    out = relative_positional_embedding_forward(embed, origin_shift,
                                                input_tokens)
    out = jax.block_until_ready(out)

    # Pure-JAX reference: embed[arange(-L, L) + origin_shift]
    positions = (jnp.arange(-seq_len, seq_len, dtype=jnp.int32)
                 + jnp.int32(origin_shift))
    ref = embed[positions]

    assert out.shape == (2 * seq_len, embedding_dim)
    assert out.dtype == jnp.float32
    assert jnp.allclose(out, ref), "Pallas HBM->HBM slice-copy mismatch vs reference"

    print("KERNEL_OK")
</pallas_src>

<mosaic_0001>
module attributes {stable_mosaic.version = 11 : i64} {
  func.func @kernel(%arg0: memref<65x32xf32, #tpu.memory_space<any>>, %arg1: memref<16x32xf32, #tpu.memory_space<any>>, %arg2: memref<!tpu.dma_semaphore, #tpu.memory_space<semaphore_mem>>) attributes {dimension_semantics = [], scalar_prefetch = 0 : i64, scratch_operands = 1 : i64, tpu.core_type = #tpu.core_type<tc>} {
    %c25_i32 = arith.constant 25 : i32
    %c0_i32 = arith.constant 0 : i32
    %0 = tpu.memref_slice %arg0[%c25_i32, %c0_i32] : memref<65x32xf32, #tpu.memory_space<any>> -> memref<16x32xf32, #tpu.memory_space<any>>
    tpu.enqueue_dma source(%0 : memref<16x32xf32, #tpu.memory_space<any>>) target(%arg1 : memref<16x32xf32, #tpu.memory_space<any>>) target_semaphore(%arg2 : memref<!tpu.dma_semaphore, #tpu.memory_space<semaphore_mem>>)
    %c25_i32_0 = arith.constant 25 : i32
    %c0_i32_1 = arith.constant 0 : i32
    %1 = tpu.memref_slice %arg0[%c25_i32_0, %c0_i32_1] : memref<65x32xf32, #tpu.memory_space<any>> -> memref<16x32xf32, #tpu.memory_space<any>>
    tpu.wait_dma2 semaphore(%arg2 : memref<!tpu.dma_semaphore, #tpu.memory_space<semaphore_mem>>) src(%1 : memref<16x32xf32, #tpu.memory_space<any>>) dst(%arg1 : memref<16x32xf32, #tpu.memory_space<any>>)
    return
  }
}

</mosaic_0001>

<llo_original>
// kernel: tpu_custom_call.1
$region0: #{tpu_custom_call.1}
  #allocation0 [shape = 'u32[]', space=smem, size = 0x4, offset = 0x4, fixed_abs, tag = 'smem constant byte address 0x4 - core index']
  #allocation1 [shape = 'u32[72,128]{1,0:T(1,128)}', space=vmem, size = 0x9000, scoped, tag = 'internal scratch']
  #allocation2 [shape = 's32[1]{0}', space=sflag, size = 0x4, scoped, tag = 'scratch operand']
  #allocation3 [shape = 's32[]', space=sflag, size = 0x4, offset = 0, fixed_abs, tag = 'sflag constant byte address 0x0 - dummy sync flag']
  #allocation4 [shape = 's32[]', space=sflag, size = 0x4, offset = 0, fixed_abs, tag = 'sflag constant byte address 0x0 - dummy sync flag']
  #allocation5 [shape = 'u32[]', space=smem, size = 0x4, offset = 0x44, fixed_abs, tag = 'smem constant byte address 0x44 - assertion arg 0']
  #allocation6 [shape = 'u32[]', space=smem, size = 0x4, offset = 0x48, fixed_abs, tag = 'smem constant byte address 0x48 - assertion arg 1']
  %s0 = inlined_call_operand.vmem [shape: f32[65,32], index: 0, kind: input, shape index: {}]
  %s1 = inlined_call_operand.hbm [shape: f32[16,32], index: 1, kind: output, shape index: {}]
  %s2 = sld [smem:[#allocation0]]
  $region6: #{tpu_custom_call.1} parent=0
    _
  %s4 = ssub.s32 1, %s2
  %s5 = scalar_select 0, %s4, %s2
  %s6 = scalar_lea.vmem %s0, 25
  // Predicated region
  $region2: #{tpu_custom_call.1} parent=0 // pred_check
    _
  $region3: #{tpu_custom_call.1} parent=0 // pred_check_branch
    %8 = sbr.rel target = $region5
  $region4: #{tpu_custom_call.1} parent=0 // pred_region
    %9 = sst [smem:[#allocation5]] [#allocation4]
    %10 = sst [smem:[#allocation6]] [#allocation3]
  $region5: #{tpu_custom_call.1} parent=0 // pred_fallthru
    _
  %12 = shalt.err (0)
  %s14 = sshll.u32 %s6, 4
  %s15 = int_to_ptr.vmem [resolvable:$true] %s14
  %s16 = sshll.u32 %s1, 4
  %s17 = int_to_ptr.hbm [resolvable:$true] %s16
  %19 = dma.vmem_to_hbm [thread:$0]  %s15, 256, %s17, [#allocation2]
  %s20 = smul.u32 16, 1
  %s21 = sshll.u32 %s20, 4
  %22 = dma.done [#allocation2], %s21
  %23 = vsyncmov [#allocation2]
  %s24 = vpop.sfrf %23
  %p25 = scmp.eq.s32.totalorder %s24, 0
  %p26 = pneg %p25
  %28 = shalt.err (%p26)

</llo_original>
